<compile_context>
chip_gen: v7x
topology: tpu7x:2x2x1
jax: 0.10.0
libtpu: 0.0.40
codegen_flags: <defaults>
</compile_context>

<pallas_src>
import functools

import jax
import jax.numpy as jnp
from jax.experimental import pallas as pl
from jax.experimental.pallas import tpu as pltpu


# ----------------------------------------------------------------------------
# One-time kernel: embed the fixed word list (hoisted out of the forward pass).
# ----------------------------------------------------------------------------
def _action_embed_kernel(wf_ref, wa1_ref, ba1_ref, wa2_ref, ba2_ref, ae_ref):
    f32 = jnp.float32
    h = jnp.dot(wf_ref[...], wa1_ref[...], preferred_element_type=f32) + ba1_ref[...]
    h = jnp.maximum(h, 0.0)
    ae_ref[...] = jnp.dot(h, wa2_ref[...], preferred_element_type=f32) + ba2_ref[...]


def precompute_action_embedding(params, *, row_tile=1024):
    """One-time: ActionEmbeddingLayer over the fixed word list -> (num_words, emb).

    Gridded over the word axis so the one-time kernel also fits VMEM at large
    vocabularies (e.g. ~13k words on v5e's 16 MiB scoped default)."""
    wf = params["word_feat"]
    num_words, word_width = wf.shape
    emb = params["W_a2"].shape[1]
    if num_words <= row_tile or num_words % row_tile != 0:
        tile = num_words
    else:
        tile = row_tile
    grid = (num_words // tile,)

    def resident(arr):
        return pl.BlockSpec(arr.shape, lambda i: (0, 0))

    return pl.pallas_call(
        _action_embed_kernel,
        out_shape=jax.ShapeDtypeStruct((num_words, emb), jnp.float32),
        grid=grid,
        in_specs=[pl.BlockSpec((tile, word_width), lambda i: (i, 0)),
                  resident(params["W_a1"]), resident(params["b_a1"]),
                  resident(params["W_a2"]), resident(params["b_a2"])],
        out_specs=pl.BlockSpec((tile, emb), lambda i: (i, 0)),
        compiler_params=pltpu.CompilerParams(dimension_semantics=("parallel",)),
    )(wf, params["W_a1"], params["b_a1"], params["W_a2"], params["b_a2"])


def prepare_inference_params(params):
    """One-time prep: hoist the action-embedding MLP, fuse actor/critic heads,
    bake the padding mask into the matmul, and quantize weights to bf16."""
    W_actor, b_actor = params["W_actor"], params["b_actor"]
    W_critic, b_critic = params["W_critic"], params["b_critic"]
    emb = W_actor.shape[0]
    # actor columns [0:emb] | critic column [emb] | constant-1 mask column [emb+1]
    head_w = ((emb + 2 + 127) // 128) * 128          # handles emb=128 -> head_w=256

    ae = precompute_action_embedding(params)          # (num_words, emb), f32
    num_words = ae.shape[0]
    nwp = ((num_words + 127) // 128) * 128            # lane-dense logits width

    W_head = jnp.zeros((emb, head_w), jnp.float32)
    W_head = W_head.at[:, :emb].set(W_actor).at[:, emb:emb + 1].set(W_critic)
    b_head = jnp.zeros((1, head_w), jnp.float32)
    b_head = b_head.at[:, :emb].set(b_actor).at[:, emb:emb + 1].set(b_critic)
    b_head = b_head.at[:, emb + 1].set(1.0)           # constant-1 lane (mask driver)

    # Pre-transposed, zero-padded action embedding: (head_w, nwp).
    #  rows [0:emb]   = ae.T
    #  row  emb       = 0        -> critic column of the head contributes nothing
    #  row  emb+1     = mask row -> 0 for valid words, -1e30 for lane padding,
    #                   multiplied by the constant-1 head column => sim comes off
    #                   the MXU already masked (no per-step iota/where, finite so
    #                   no 0*inf hazard).
    ae_pad = jnp.zeros((head_w, nwp), jnp.float32)
    ae_pad = ae_pad.at[:emb, :num_words].set(ae.T)
    mask_row = jnp.where(jnp.arange(nwp) < num_words, 0.0, -1e30)
    ae_pad = ae_pad.at[emb + 1, :].set(mask_row)

    return dict(
        W_state=params["W_state"].astype(jnp.bfloat16),
        b_state=params["b_state"],                     # biases stay f32
        W_head=W_head.astype(jnp.bfloat16),
        b_head=b_head,
        ae_pad=ae_pad.astype(jnp.bfloat16),            # zeros stay exactly zero in bf16
        num_words=num_words, nwp=nwp, emb=emb, head_w=head_w)


# ----------------------------------------------------------------------------
# Per-step (batched) forward kernel.
# ----------------------------------------------------------------------------
def _forward_kernel(emb, x_ref, ws_ref, bs_ref, wh_ref, bh_ref, ae_ref,
                    a_ref, c_ref):
    f32, bf16 = jnp.float32, jnp.bfloat16

    # StateEmbeddingLayer: Linear + ReLU -> (TB, emb)   (bf16 MXU, f32 accumulate)
    s = jnp.dot(x_ref[...], ws_ref[...], preferred_element_type=f32) + bs_ref[...]
    s = jnp.maximum(s, 0.0)

    # Fused actor|critic|const head -> (TB, head_w), f32.
    head = jnp.dot(s.astype(bf16), wh_ref[...], preferred_element_type=f32) + bh_ref[...]

    # Critic: write only its single column (no full-slab HBM writeback).
    c_ref[...] = head[:, emb:emb + 1]

    # Similarity: (TB, head_w) @ (head_w, nwp).  Zero rows of ae_pad nullify the
    # critic column; the constant-1 column times the mask row pre-masks the lane
    # padding to -1e30, so sim equals actor @ A.T on valid columns.
    sim = jnp.dot(head.astype(bf16), ae_ref[...], preferred_element_type=f32)

    # log_softmax over the word axis (padded columns hold -1e30 -> exp == 0).
    m = jnp.max(sim, axis=-1, keepdims=True)
    z = sim - m
    lse = jnp.log(jnp.sum(jnp.exp(z), axis=-1, keepdims=True))
    a_ref[...] = z - lse


def actor_critic_forward(x, infer, *, batch_tile=None):
    """x: (B, state_size). Returns (a: (B, num_words) f32, c: (B, 1) f32)."""
    B, S = x.shape
    head_w, nwp = infer["head_w"], infer["nwp"]
    num_words, emb = infer["num_words"], infer["emb"]

    if batch_tile is None:
        # Single grid step: optimal on single-TC v5e/v6e (no per-step pipeline
        # overhead, max MXU M-occupancy).
        # TODO(synk): on v7x (2 TensorCores) with B >= 256, pass batch_tile=B//2
        # so the ("parallel",) grid gives each core one >=128-row step.
        tb = B
    else:
        tb = min(batch_tile, B)
    assert B % tb == 0 and (tb == B or tb % 8 == 0)
    grid = (B // tb,)

    kernel = functools.partial(_forward_kernel, emb)

    def resident(arr):  # full-array weight block, same tile for every grid step
        return pl.BlockSpec(arr.shape, lambda i: (0, 0))

    a, c = pl.pallas_call(
        kernel,
        out_shape=(jax.ShapeDtypeStruct((B, nwp), jnp.float32),
                   jax.ShapeDtypeStruct((B, 1), jnp.float32)),
        grid=grid,
        in_specs=[pl.BlockSpec((tb, S), lambda i: (i, 0)),
                  resident(infer["W_state"]), resident(infer["b_state"]),
                  resident(infer["W_head"]), resident(infer["b_head"]),
                  resident(infer["ae_pad"])],
        out_specs=(pl.BlockSpec((tb, nwp), lambda i: (i, 0)),
                   pl.BlockSpec((tb, 1), lambda i: (i, 0))),
        compiler_params=pltpu.CompilerParams(dimension_semantics=("parallel",)),
    )(x.astype(jnp.bfloat16), infer["W_state"], infer["b_state"],
      infer["W_head"], infer["b_head"], infer["ae_pad"])

    # Strip lane padding of the logits; critic is already (B, 1).
    return a[:, :num_words], c


# ----------------------------------------------------------------------------
# Parameter init + pure-JAX references.
# ----------------------------------------------------------------------------
def _linear_params(key, fan_in, fan_out):
    # torch.nn.Linear default: U(-1/sqrt(fan_in), 1/sqrt(fan_in)) for W and b.
    kw, kb = jax.random.split(key)
    bound = 1.0 / jnp.sqrt(fan_in)
    w = jax.random.uniform(kw, (fan_in, fan_out), jnp.float32, -bound, bound)
    b = jax.random.uniform(kb, (1, fan_out), jnp.float32, -bound, bound)
    return w, b


def init_params(key, state_size, embedding_size, num_words, word_width, hidden):
    ks = jax.random.split(key, 6)
    W_state, b_state = _linear_params(ks[0], state_size, embedding_size)
    W_a1, b_a1 = _linear_params(ks[1], word_width, hidden)
    W_a2, b_a2 = _linear_params(ks[2], hidden, embedding_size)
    W_actor, b_actor = _linear_params(ks[3], embedding_size, embedding_size)
    W_critic, b_critic = _linear_params(ks[4], embedding_size, 1)
    # deterministic synthetic word-list features (e.g. binary letter indicators)
    word_feat = (jax.random.uniform(ks[5], (num_words, word_width)) < 0.2).astype(jnp.float32)
    return dict(W_state=W_state, b_state=b_state,
                word_feat=word_feat,
                W_a1=W_a1, b_a1=b_a1, W_a2=W_a2, b_a2=b_a2,
                W_actor=W_actor, b_actor=b_actor,
                W_critic=W_critic, b_critic=b_critic)


def reference_forward(x, p, *, quantized=False):
    """Per-row equivalent of the PyTorch forward.  quantized=True mirrors the
    kernel's bf16 weight/activation rounding (MXU: exact bf16 products, f32 acc)."""
    if quantized:
        r = lambda t: t.astype(jnp.bfloat16).astype(jnp.float32)
    else:
        r = lambda t: t
    s = jnp.maximum(r(x) @ r(p["W_state"]) + p["b_state"], 0.0)
    sq = r(s)
    actor = sq @ r(p["W_actor"]) + p["b_actor"]
    critic = sq @ r(p["W_critic"]) + p["b_critic"]
    h = jnp.maximum(p["word_feat"] @ p["W_a1"] + p["b_a1"], 0.0)
    ae = h @ p["W_a2"] + p["b_a2"]
    sim = r(actor) @ r(ae).T      # == torch.tensordot(actor_i, ae, dims=((0,),(1,))) per sample
    a = jax.nn.log_softmax(sim, axis=-1)
    return a, critic


if __name__ == "__main__":
    state_size = 32
    embedding_size = 32
    hidden = 128        # ActionEmbeddingLayer hidden_size=128 per __init__
    num_words = 64      # len(word_list)
    word_width = 128    # per-word feature width
    batch = 128         # batched rollout states

    key = jax.random.PRNGKey(0)
    kx, kp = jax.random.split(key)
    x = jax.random.normal(kx, (batch, state_size), jnp.float32)
    params = init_params(kp, state_size, embedding_size, num_words, word_width, hidden)

    # One-time prep: Pallas action-embedding kernel + head fusion + bf16 + padding.
    infer = prepare_inference_params(params)

    a, c = actor_critic_forward(x, infer)
    jax.block_until_ready((a, c))

    assert a.shape == (batch, num_words) and c.shape == (batch, 1)

    # Tight check vs a reference that mirrors the kernel's bf16 quantization.
    a_q, c_q = reference_forward(x, params, quantized=True)
    assert jnp.allclose(a, a_q, atol=3e-3, rtol=3e-3)
    assert jnp.allclose(c, c_q, atol=3e-3, rtol=3e-3)

    # Loose check vs the full-f32 PyTorch-equivalent forward (bf16 weight error).
    a_f, c_f = reference_forward(x, params, quantized=False)
    assert jnp.allclose(a, a_f, atol=5e-2, rtol=5e-2)
    assert jnp.allclose(c, c_f, atol=5e-2, rtol=5e-2)

    print("KERNEL_OK")
</pallas_src>

<mosaic_0001>
module attributes {stable_mosaic.version = 11 : i64} {
  func.func @_action_embed_kernel(%arg0: i32, %arg1: memref<64x128xf32, #tpu.memory_space<vmem>>, %arg2: memref<128x128xf32, #tpu.memory_space<vmem>>, %arg3: memref<1x128xf32, #tpu.memory_space<vmem>>, %arg4: memref<128x32xf32, #tpu.memory_space<vmem>>, %arg5: memref<1x32xf32, #tpu.memory_space<vmem>>, %arg6: memref<64x32xf32, #tpu.memory_space<vmem>>) attributes {dimension_semantics = [#tpu.dimension_semantics<parallel>], iteration_bounds = array<i64: 1>, scalar_prefetch = 0 : i64, scratch_operands = 0 : i64, tpu.core_type = #tpu.core_type<tc>, window_params = [{transform_indices = @transform_0, window_bounds = array<i64: 64, 128>}, {pipeline_mode = #tpu.pipeline_mode<synchronous>, transform_indices = @transform_1, window_bounds = array<i64: 128, 128>}, {pipeline_mode = #tpu.pipeline_mode<synchronous>, transform_indices = @transform_2, window_bounds = array<i64: 1, 128>}, {pipeline_mode = #tpu.pipeline_mode<synchronous>, transform_indices = @transform_3, window_bounds = array<i64: 128, 32>}, {pipeline_mode = #tpu.pipeline_mode<synchronous>, transform_indices = @transform_4, window_bounds = array<i64: 1, 32>}, {transform_indices = @transform_5, window_bounds = array<i64: 64, 32>}]} {
    %c0 = arith.constant 0 : index
    %c0_0 = arith.constant 0 : index
    %0 = vector.load %arg1[%c0, %c0_0] : memref<64x128xf32, #tpu.memory_space<vmem>>, vector<64x128xf32>
    %c0_1 = arith.constant 0 : index
    %c0_2 = arith.constant 0 : index
    %1 = vector.load %arg2[%c0_1, %c0_2] : memref<128x128xf32, #tpu.memory_space<vmem>>, vector<128x128xf32>
    %cst = arith.constant dense<0.000000e+00> : vector<64x128xf32>
    %2 = tpu.matmul %0, %1, %cst {dimension_numbers = #tpu.dot_dimension_numbers<[1], [0], [0], [1], [0, 0, 1, 1], [], []>} : vector<64x128xf32>, vector<128x128xf32>, vector<64x128xf32> -> vector<64x128xf32>
    %c0_3 = arith.constant 0 : index
    %c0_4 = arith.constant 0 : index
    %3 = vector.load %arg3[%c0_3, %c0_4] : memref<1x128xf32, #tpu.memory_space<vmem>>, vector<1x128xf32>
    %4 = vector.broadcast %3 : vector<1x128xf32> to vector<64x128xf32>
    %5 = arith.addf %2, %4 : vector<64x128xf32>
    %cst_5 = arith.constant 0.000000e+00 : f32
    %6 = vector.broadcast %cst_5 : f32 to vector<64x128xf32>
    %7 = arith.maximumf %5, %6 : vector<64x128xf32>
    %c0_6 = arith.constant 0 : index
    %c0_7 = arith.constant 0 : index
    %8 = vector.load %arg4[%c0_6, %c0_7] : memref<128x32xf32, #tpu.memory_space<vmem>>, vector<128x32xf32>
    %cst_8 = arith.constant dense<0.000000e+00> : vector<64x32xf32>
    %9 = tpu.matmul %7, %8, %cst_8 {dimension_numbers = #tpu.dot_dimension_numbers<[1], [0], [0], [1], [0, 0, 1, 1], [], []>} : vector<64x128xf32>, vector<128x32xf32>, vector<64x32xf32> -> vector<64x32xf32>
    %c0_9 = arith.constant 0 : index
    %c0_10 = arith.constant 0 : index
    %10 = vector.load %arg5[%c0_9, %c0_10] : memref<1x32xf32, #tpu.memory_space<vmem>>, vector<1x32xf32>
    %11 = vector.broadcast %10 : vector<1x32xf32> to vector<64x32xf32>
    %12 = arith.addf %9, %11 : vector<64x32xf32>
    %c0_11 = arith.constant 0 : index
    %c0_12 = arith.constant 0 : index
    %13 = vector.load %arg6[%c0_11, %c0_12] : memref<64x32xf32, #tpu.memory_space<vmem>>, vector<64x32xf32>
    tpu.vector_store %arg6[%c0_11, %c0_12], %12 {strides = array<i32>} : memref<64x32xf32, #tpu.memory_space<vmem>>, vector<64x32xf32>,
    return
  }
  func.func @transform_0(%arg0: i32) -> (i32, i32) {
    %c0_i32 = arith.constant 0 : i32
    %c0_i32_0 = arith.constant 0 : i32
    return %arg0, %c0_i32 : i32, i32
  }
  func.func @transform_1(%arg0: i32) -> (i32, i32) {
    %c0_i32 = arith.constant 0 : i32
    %c0_i32_0 = arith.constant 0 : i32
    %c0_i32_1 = arith.constant 0 : i32
    return %c0_i32, %c0_i32_0 : i32, i32
  }
  func.func @transform_2(%arg0: i32) -> (i32, i32) {
    %c0_i32 = arith.constant 0 : i32
    %c0_i32_0 = arith.constant 0 : i32
    %c0_i32_1 = arith.constant 0 : i32
    return %c0_i32, %c0_i32_0 : i32, i32
  }
  func.func @transform_3(%arg0: i32) -> (i32, i32) {
    %c0_i32 = arith.constant 0 : i32
    %c0_i32_0 = arith.constant 0 : i32
    %c0_i32_1 = arith.constant 0 : i32
    return %c0_i32, %c0_i32_0 : i32, i32
  }
  func.func @transform_4(%arg0: i32) -> (i32, i32) {
    %c0_i32 = arith.constant 0 : i32
    %c0_i32_0 = arith.constant 0 : i32
    %c0_i32_1 = arith.constant 0 : i32
    return %c0_i32, %c0_i32_0 : i32, i32
  }
  func.func @transform_5(%arg0: i32) -> (i32, i32) {
    %c0_i32 = arith.constant 0 : i32
    %c0_i32_0 = arith.constant 0 : i32
    return %arg0, %c0_i32 : i32, i32
  }
}

</mosaic_0001>

<llo_original>
// kernel: tpu_custom_call.1
$region0: #{tpu_custom_call.1}
  #allocation0 [shape = 'u32[]', space=smem, size = 0x4, offset = 0x4, fixed_abs, tag = 'smem constant byte address 0x4 - core index']
  #allocation1 [shape = 'u32[144,128]{1,0:T(1,128)}', space=vmem, size = 0x12000, scoped, tag = 'internal scratch']
  %s0 = inlined_call_operand.hbm [shape: f32[64,128], index: 0, kind: input, shape index: {}]
  %s1 = inlined_call_operand.vmem [shape: f32[128,128], index: 1, kind: input, shape index: {}]
  %s2 = inlined_call_operand.vmem [shape: f32[1,128], index: 2, kind: input, shape index: {}]
  %s3 = inlined_call_operand.vmem [shape: f32[128,32], index: 3, kind: input, shape index: {}]
  %s4 = inlined_call_operand.vmem [shape: f32[1,32], index: 4, kind: input, shape index: {}]
  %s5 = inlined_call_operand.vmem [shape: f32[64,32], index: 5, kind: output, shape index: {}]
  %s6 = sld [smem:[#allocation0]]
  $region34: #{tpu_custom_call.1} parent=0
    _
  %s8 = ssub.s32 1, %s6
  %s9 = scalar_select 0, %s8, %s6
  $region1: #{tpu_custom_call.1} parent=0
    #allocation2 [shape = 'u8[32768]{0}', space=vmem, size = 0x8000, scoped, tag = 'input window, operand 0, single buffered']
    #allocation3 [shape = 's32[1]{0}', space=sflag, size = 0x4, scoped, tag = 'scoped memory for tpu_custom_call.1']
    %10 = vsyncpa [#allocation3], 0
    // Predicated region
    $region2: #{tpu_custom_call.1} parent=1 // pred_check
      _
    $region3: #{tpu_custom_call.1} parent=1 // pred_check_branch
      %12 = sbr.rel (0) target = $region5
    $region4: #{tpu_custom_call.1} parent=1 // pred_region
      %s14 = ssub.s32 1024, 1024
      %15 = vsyncadd [#allocation3], %s14
      %s16 = sshll.u32 [#allocation2], 4
      %s17 = int_to_ptr.vmem [resolvable:$true] %s16
      %22 = dma.hbm_to_vmem [thread:$0]  %s0, 1024, %s17, [#allocation3], 128, 128, 8
    $region5: #{tpu_custom_call.1} parent=1 // pred_fallthru
      _
    // Predicated region
    $region6: #{tpu_custom_call.1} parent=1 // pred_check
      _
    $region7: #{tpu_custom_call.1} parent=1 // pred_check_branch
      %24 = sbr.rel (0) target = $region9
    $region8: #{tpu_custom_call.1} parent=1 // pred_region
      _
    $region9: #{tpu_custom_call.1} parent=1 // pred_fallthru
      _
    // Predicated region
    $region10: #{tpu_custom_call.1} parent=1 // pred_check
      _
    $region11: #{tpu_custom_call.1} parent=1 // pred_check_branch
      %26 = sbr.rel (0) target = $region13
    $region12: #{tpu_custom_call.1} parent=1 // pred_region
      _
    $region13: #{tpu_custom_call.1} parent=1 // pred_fallthru
      _
    // Predicated region
    $region14: #{tpu_custom_call.1} parent=1 // pred_check
      _
    $region15: #{tpu_custom_call.1} parent=1 // pred_check_branch
      %28 = sbr.rel (0) target = $region17
    $region16: #{tpu_custom_call.1} parent=1 // pred_region
      _
    $region17: #{tpu_custom_call.1} parent=1 // pred_fallthru
      _
    // Predicated region
    $region18: #{tpu_custom_call.1} parent=1 // pred_check
      _
    $region19: #{tpu_custom_call.1} parent=1 // pred_check_branch
      %30 = sbr.rel (0) target = $region21
    $region20: #{tpu_custom_call.1} parent=1 // pred_region
      _
    $region21: #{tpu_custom_call.1} parent=1 // pred_fallthru
      _
    // Predicated region
    $region22: #{tpu_custom_call.1} parent=1 // pred_check
      _
    $region23: #{tpu_custom_call.1} parent=1 // pred_check_branch
      %32 = sbr.rel (0) target = $region25
    $region24: #{tpu_custom_call.1} parent=1 // pred_region
      %33 = dma.done [#allocation3], 1024
    $region25: #{tpu_custom_call.1} parent=1 // pred_fallthru
      _
    %v34 = vld [vmem:[#allocation2] sm:$0xff]
    %v35 = vld [vmem:[#allocation2 + $0x8] sm:$0xff]
    %v36 = vld [vmem:[#allocation2 + $0x10] sm:$0xff]
    %v37 = vld [vmem:[#allocation2 + $0x18] sm:$0xff]
    %v38 = vld [vmem:[#allocation2 + $0x20] sm:$0xff]
    %v39 = vld [vmem:[#allocation2 + $0x28] sm:$0xff]
    %v40 = vld [vmem:[#allocation2 + $0x30] sm:$0xff]
    %v41 = vld [vmem:[#allocation2 + $0x38] sm:$0xff]
    %v42 = vld [vmem:[%s1] sm:$0xff]
    %v43 = vld [vmem:[%s1 + $0x8] sm:$0xff]
    %v44 = vld [vmem:[%s1 + $0x10] sm:$0xff]
    %v45 = vld [vmem:[%s1 + $0x18] sm:$0xff]
    %v46 = vld [vmem:[%s1 + $0x20] sm:$0xff]
    %v47 = vld [vmem:[%s1 + $0x28] sm:$0xff]
    %v48 = vld [vmem:[%s1 + $0x30] sm:$0xff]
    %v49 = vld [vmem:[%s1 + $0x38] sm:$0xff]
    %v50 = vld [vmem:[%s1 + $0x40] sm:$0xff]
    %v51 = vld [vmem:[%s1 + $0x48] sm:$0xff]
    %v52 = vld [vmem:[%s1 + $0x50] sm:$0xff]
    %v53 = vld [vmem:[%s1 + $0x58] sm:$0xff]
    %v54 = vld [vmem:[%s1 + $0x60] sm:$0xff]
    %v55 = vld [vmem:[%s1 + $0x68] sm:$0xff]
    %v56 = vld [vmem:[%s1 + $0x70] sm:$0xff]
    %v57 = vld [vmem:[%s1 + $0x78] sm:$0xff]
    %v58 = vld [vmem:[%s2] sm:$0x1]
    %v60 = vlaneseq
    %v61 = vshrl.u32 %v60, 7
    %v62 = vsub.s32 0, %v61
    %v63 = vrot.slane %v58, %v62
    %65 = vmatprep.subr.mxu0 0.0
    %66 = vmatpush1.msra.mxu0 %v42
    %67 = vmatprep.subr.mxu0 0.0
    %68 = vmatpush1.msra.mxu0 %v43
    %69 = vmatprep.subr.mxu0 0.0
    %70 = vmatpush1.msra.mxu0 %v44
    %71 = vmatprep.subr.mxu0 0.0
    %72 = vmatpush1.msra.mxu0 %v45
    %73 = vmatprep.subr.mxu0 0.0
    %74 = vmatpush1.msra.mxu0 %v46
    %75 = vmatprep.subr.mxu0 0.0
    %76 = vmatpush1.msra.mxu0 %v47
    %77 = vmatprep.subr.mxu0 0.0
    %78 = vmatpush1.msra.mxu0 %v48
    %79 = vmatprep.subr.mxu0 0.0
    %80 = vmatpush1.msra.mxu0 %v49
    %81 = vmatprep.subr.mxu0 0.0
    %82 = vmatpush1.msra.mxu0 %v50
    %83 = vmatprep.subr.mxu0 0.0
    %84 = vmatpush1.msra.mxu0 %v51
    %85 = vmatprep.subr.mxu0 0.0
    %86 = vmatpush1.msra.mxu0 %v52
    %87 = vmatprep.subr.mxu0 0.0
    %88 = vmatpush1.msra.mxu0 %v53
    %89 = vmatprep.subr.mxu0 0.0
    %90 = vmatpush1.msra.mxu0 %v54
    %91 = vmatprep.subr.mxu0 0.0
    %92 = vmatpush1.msra.mxu0 %v55
    %93 = vmatprep.subr.mxu0 0.0
    %94 = vmatpush1.msra.mxu0 %v56
    %95 = vmatprep.subr.mxu0 0.0
    %96 = vmatpush1.msra.mxu0 %v57
    %97 = vmatprep.subr.mxu0 0.0
    %98 = vmatpush1.msra.mxu0 0.0
    %99 = vmatprep.subr.mxu0 0.0
    %100 = vmatpush1.msra.mxu0 0.0
    %101 = vmatprep.subr.mxu0 0.0
    %102 = vmatpush1.msra.mxu0 0.0
    %103 = vmatprep.subr.mxu0 0.0
    %104 = vmatpush1.msra.mxu0 0.0
    %105 = vmatprep.subr.mxu0 0.0
    %106 = vmatpush1.msra.mxu0 0.0
    %107 = vmatprep.subr.mxu0 0.0
    %108 = vmatpush1.msra.mxu0 0.0
    %109 = vmatprep.subr.mxu0 0.0
    %110 = vmatpush1.msra.mxu0 0.0
    %111 = vmatprep.subr.mxu0 0.0
    %112 = vmatpush1.msra.mxu0 0.0
    %113 = vmatprep.subr.mxu0 0.0
    %114 = vmatpush1.msra.mxu0 0.0
    %115 = vmatprep.subr.mxu0 0.0
    %116 = vmatpush1.msra.mxu0 0.0
    %117 = vmatprep.subr.mxu0 0.0
    %118 = vmatpush1.msra.mxu0 0.0
    %119 = vmatprep.subr.mxu0 0.0
    %120 = vmatpush1.msra.mxu0 0.0
    %121 = vmatprep.subr.mxu0 0.0
    %122 = vmatpush1.msra.mxu0 0.0
    %123 = vmatprep.subr.mxu0 0.0
    %124 = vmatpush1.msra.mxu0 0.0
    %125 = vmatprep.subr.mxu0 0.0
    %126 = vmatpush1.msra.mxu0 0.0
    %127 = vmatprep.subr.mxu0 0.0
    %128 = vmatpush1.msra.mxu0 0.0
    %129 = vmatprep.mubr.f32.mxu0 0.0
    %130 = vmatmul.mubr.f32.gmra.mrb[0].mxu0 %v34
    %v131 = vpop.f32.mrb[0].mxu0
    %v132 = vadd.f32 %v63, %v131
    %v133 = vpop.f32.mrb[0].mxu0
    %134 = vmatprep.mubr.f32.mxu0 0.0
    %135 = vmatmul.mubr.f32.gmra.mrb[0].mxu0 %v35
    %v136 = vpop.f32.mrb[0].mxu0
    %v137 = vadd.f32 %v63, %v136
    %v138 = vpop.f32.mrb[0].mxu0
    %139 = vmatprep.mubr.f32.mxu0 0.0
    %140 = vmatmul.mubr.f32.gmra.mrb[0].mxu0 %v36
    %v141 = vpop.f32.mrb[0].mxu0
    %v142 = vadd.f32 %v63, %v141
    %v143 = vpop.f32.mrb[0].mxu0
    %144 = vmatprep.mubr.f32.mxu0 0.0
    %145 = vmatmul.mubr.f32.gmra.mrb[0].mxu0 %v37
    %v146 = vpop.f32.mrb[0].mxu0
    %v147 = vadd.f32 %v63, %v146
    %v148 = vpop.f32.mrb[0].mxu0
    %149 = vmatprep.mubr.f32.mxu0 0.0
    %150 = vmatmul.mubr.f32.gmra.mrb[0].mxu0 %v38
    %v151 = vpop.f32.mrb[0].mxu0
    %v152 = vadd.f32 %v63, %v151
    %v153 = vpop.f32.mrb[0].mxu0
    %154 = vmatprep.mubr.f32.mxu0 0.0
    %155 = vmatmul.mubr.f32.gmra.mrb[0].mxu0 %v39
    %v156 = vpop.f32.mrb[0].mxu0
    %v157 = vadd.f32 %v63, %v156
    %v158 = vpop.f32.mrb[0].mxu0
    %159 = vmatprep.mubr.f32.mxu0 0.0
    %160 = vmatmul.mubr.f32.gmra.mrb[0].mxu0 %v40
    %v161 = vpop.f32.mrb[0].mxu0
    %v162 = vadd.f32 %v63, %v161
    %v163 = vpop.f32.mrb[0].mxu0
    %164 = vmatprep.mubr.f32.mxu0 0.0
    %165 = vmatmul.mubr.f32.gmra.mrb[0].mxu0 %v41
    %v166 = vpop.f32.mrb[0].mxu0
    %v167 = vadd.f32 %v63, %v166
    %v168 = vpop.f32.mrb[0].mxu0
    %169 = vdwg.mxu0
    %v170 = vmax.f32 %v132, 0.0
    %v171 = vmax.f32 %v137, 0.0
    %v172 = vmax.f32 %v142, 0.0
    %v173 = vmax.f32 %v147, 0.0
    %v174 = vmax.f32 %v152, 0.0
    %v175 = vmax.f32 %v157, 0.0
    %v176 = vmax.f32 %v162, 0.0
    %v177 = vmax.f32 %v167, 0.0
    %v178 = vld [vmem:[%s3] sm:$0xff]
    %v179 = vld [vmem:[%s3 + $0x8] sm:$0xff]
    %v180 = vld [vmem:[%s3 + $0x10] sm:$0xff]
    %v181 = vld [vmem:[%s3 + $0x18] sm:$0xff]
    %v182 = vld [vmem:[%s3 + $0x20] sm:$0xff]
    %v183 = vld [vmem:[%s3 + $0x28] sm:$0xff]
    %v184 = vld [vmem:[%s3 + $0x30] sm:$0xff]
    %v185 = vld [vmem:[%s3 + $0x38] sm:$0xff]
    %v186 = vld [vmem:[%s3 + $0x40] sm:$0xff]
    %v187 = vld [vmem:[%s3 + $0x48] sm:$0xff]
    %v188 = vld [vmem:[%s3 + $0x50] sm:$0xff]
    %v189 = vld [vmem:[%s3 + $0x58] sm:$0xff]
    %v190 = vld [vmem:[%s3 + $0x60] sm:$0xff]
    %v191 = vld [vmem:[%s3 + $0x68] sm:$0xff]
    %v192 = vld [vmem:[%s3 + $0x70] sm:$0xff]
    %v193 = vld [vmem:[%s3 + $0x78] sm:$0xff]
    %v194 = vld [vmem:[%s4] sm:$0x1]
    %v196 = vlaneseq
    %v197 = vshrl.u32 %v196, 7
    %v198 = vsub.s32 0, %v197
    %v199 = vrot.slane %v194, %v198
    %201 = vmatprep.subr.mxu0 0.0
    %202 = vmatpush1.msra.mxu0 %v178
    %203 = vmatprep.subr.mxu0 0.0
    %204 = vmatpush1.msra.mxu0 %v179
    %205 = vmatprep.subr.mxu0 0.0
    %206 = vmatpush1.msra.mxu0 %v180
    %207 = vmatprep.subr.mxu0 0.0
    %208 = vmatpush1.msra.mxu0 %v181
    %209 = vmatprep.subr.mxu0 0.0
    %210 = vmatpush1.msra.mxu0 %v182
    %211 = vmatprep.subr.mxu0 0.0
    %212 = vmatpush1.msra.mxu0 %v183
    %213 = vmatprep.subr.mxu0 0.0
    %214 = vmatpush1.msra.mxu0 %v184
    %215 = vmatprep.subr.mxu0 0.0
    %216 = vmatpush1.msra.mxu0 %v185
    %217 = vmatprep.subr.mxu0 0.0
    %218 = vmatpush1.msra.mxu0 %v186
    %219 = vmatprep.subr.mxu0 0.0
    %220 = vmatpush1.msra.mxu0 %v187
    %221 = vmatprep.subr.mxu0 0.0
    %222 = vmatpush1.msra.mxu0 %v188
    %223 = vmatprep.subr.mxu0 0.0
    %224 = vmatpush1.msra.mxu0 %v189
    %225 = vmatprep.subr.mxu0 0.0
    %226 = vmatpush1.msra.mxu0 %v190
    %227 = vmatprep.subr.mxu0 0.0
    %228 = vmatpush1.msra.mxu0 %v191
    %229 = vmatprep.subr.mxu0 0.0
    %230 = vmatpush1.msra.mxu0 %v192
    %231 = vmatprep.subr.mxu0 0.0
    %232 = vmatpush1.msra.mxu0 %v193
    %233 = vmatprep.subr.mxu0 0.0
    %234 = vmatpush1.msra.mxu0 0.0
    %235 = vmatprep.subr.mxu0 0.0
    %236 = vmatpush1.msra.mxu0 0.0
    %237 = vmatprep.subr.mxu0 0.0
    %238 = vmatpush1.msra.mxu0 0.0
    %239 = vmatprep.subr.mxu0 0.0
    %240 = vmatpush1.msra.mxu0 0.0
    %241 = vmatprep.subr.mxu0 0.0
    %242 = vmatpush1.msra.mxu0 0.0
    %243 = vmatprep.subr.mxu0 0.0
    %244 = vmatpush1.msra.mxu0 0.0
    %245 = vmatprep.subr.mxu0 0.0
    %246 = vmatpush1.msra.mxu0 0.0
    %247 = vmatprep.subr.mxu0 0.0
    %248 = vmatpush1.msra.mxu0 0.0
    %249 = vmatprep.subr.mxu0 0.0
    %250 = vmatpush1.msra.mxu0 0.0
    %251 = vmatprep.subr.mxu0 0.0
    %252 = vmatpush1.msra.mxu0 0.0
    %253 = vmatprep.subr.mxu0 0.0
    %254 = vmatpush1.msra.mxu0 0.0
    %255 = vmatprep.subr.mxu0 0.0
    %256 = vmatpush1.msra.mxu0 0.0
    %257 = vmatprep.subr.mxu0 0.0
    %258 = vmatpush1.msra.mxu0 0.0
    %259 = vmatprep.subr.mxu0 0.0
    %260 = vmatpush1.msra.mxu0 0.0
    %261 = vmatprep.subr.mxu0 0.0
    %262 = vmatpush1.msra.mxu0 0.0
    %263 = vmatprep.subr.mxu0 0.0
    %264 = vmatpush1.msra.mxu0 0.0
    %265 = vmatprep.mubr.f32.mxu0 0.0
    %266 = vmatmul.mubr.f32.gmra.mrb[0].mxu0 %v170
    %v267 = vpop.f32.mrb[0].mxu0
    %v268 = vadd.f32 %v199, %v267
    %v269 = vpop.f32.mrb[0].mxu0
    %270 = vmatprep.mubr.f32.mxu0 0.0
    %271 = vmatmul.mubr.f32.gmra.mrb[0].mxu0 %v171
    %v272 = vpop.f32.mrb[0].mxu0
    %v273 = vadd.f32 %v199, %v272
    %v274 = vpop.f32.mrb[0].mxu0
    %275 = vmatprep.mubr.f32.mxu0 0.0
    %276 = vmatmul.mubr.f32.gmra.mrb[0].mxu0 %v172
    %v277 = vpop.f32.mrb[0].mxu0
    %v278 = vadd.f32 %v199, %v277
    %v279 = vpop.f32.mrb[0].mxu0
    %280 = vmatprep.mubr.f32.mxu0 0.0
    %281 = vmatmul.mubr.f32.gmra.mrb[0].mxu0 %v173
    %v282 = vpop.f32.mrb[0].mxu0
    %v283 = vadd.f32 %v199, %v282
    %v284 = vpop.f32.mrb[0].mxu0
    %285 = vmatprep.mubr.f32.mxu0 0.0
    %286 = vmatmul.mubr.f32.gmra.mrb[0].mxu0 %v174
    %v287 = vpop.f32.mrb[0].mxu0
    %v288 = vadd.f32 %v199, %v287
    %v289 = vpop.f32.mrb[0].mxu0
    %290 = vmatprep.mubr.f32.mxu0 0.0
    %291 = vmatmul.mubr.f32.gmra.mrb[0].mxu0 %v175
    %v292 = vpop.f32.mrb[0].mxu0
    %v293 = vadd.f32 %v199, %v292
    %v294 = vpop.f32.mrb[0].mxu0
    %295 = vmatprep.mubr.f32.mxu0 0.0
    %296 = vmatmul.mubr.f32.gmra.mrb[0].mxu0 %v176
    %v297 = vpop.f32.mrb[0].mxu0
    %v298 = vadd.f32 %v199, %v297
    %v299 = vpop.f32.mrb[0].mxu0
    %300 = vmatprep.mubr.f32.mxu0 0.0
    %301 = vmatmul.mubr.f32.gmra.mrb[0].mxu0 %v177
    %v302 = vpop.f32.mrb[0].mxu0
    %v303 = vadd.f32 %v199, %v302
    %v304 = vpop.f32.mrb[0].mxu0
    %305 = vdwg.mxu0
    %vm306 = vcmask 261120
    %307 = vst.msk [vmem:[%s5] sm:$0xff] %vm306, %v268
    %308 = vst.msk [vmem:[%s5 + $0x8] sm:$0xff] %vm306, %v273
    %309 = vst.msk [vmem:[%s5 + $0x10] sm:$0xff] %vm306, %v278
    %310 = vst.msk [vmem:[%s5 + $0x18] sm:$0xff] %vm306, %v283
    %311 = vst.msk [vmem:[%s5 + $0x20] sm:$0xff] %vm306, %v288
    %312 = vst.msk [vmem:[%s5 + $0x28] sm:$0xff] %vm306, %v293
    %313 = vst.msk [vmem:[%s5 + $0x30] sm:$0xff] %vm306, %v298
    %314 = vst.msk [vmem:[%s5 + $0x38] sm:$0xff] %vm306, %v303
    // Predicated region
    $region26: #{tpu_custom_call.1} parent=1 // pred_check
      _
    $region27: #{tpu_custom_call.1} parent=1 // pred_check_branch
      %316 = sbr.rel (0) target = $region29
    $region28: #{tpu_custom_call.1} parent=1 // pred_region
      _
    $region29: #{tpu_custom_call.1} parent=1 // pred_fallthru
      _
    // Predicated region
    $region30: #{tpu_custom_call.1} parent=1 // pred_check
      _
    $region31: #{tpu_custom_call.1} parent=1 // pred_check_branch
      %318 = sbr.rel (0) target = $region33
    $region32: #{tpu_custom_call.1} parent=1 // pred_region
      _
    $region33: #{tpu_custom_call.1} parent=1 // pred_fallthru
      _
    %319 = vsyncpa [#allocation3], 1

</llo_original>
